<compile_context>
chip_gen: v7x
topology: tpu7x:2x2x1
jax: 0.10.0
libtpu: 0.0.40
codegen_flags: <defaults>
</compile_context>

<pallas_src>
import functools

import jax
import jax.numpy as jnp
from jax import lax
from jax.experimental import pallas as pl
from jax.experimental.pallas import tpu as pltpu


# --------------------------------------------------------------------------- #
# Kernels
# --------------------------------------------------------------------------- #
def _nce_kernel(q_ref, kT_ref, kpos_ref, o_ref, *, inv_T, fold_scale, bounded):
    """Unweighted NCE row tile — no diagonal mask at all (lse correction)."""
    inv = jnp.float32(inv_T)

    q = q_ref[...]                                   # (bt, tq, D)
    kT = kT_ref[...]                                 # (bt, D,  P) lane-dense
    if fold_scale:
        # f32 path: fold 1/T into q (D << P) so the (tq, P) tile needs no scale.
        q = q.astype(jnp.float32) * inv

    neg = jnp.einsum("btd,bdp->btp", q, kT,
                     preferred_element_type=jnp.float32)          # (bt,tq,P)
    if not fold_scale:
        neg = neg * inv

    # Positive logits in f32 (cheap: D-wide elementwise reduce).
    kpos = kpos_ref[...].astype(jnp.float32)                      # (bt,tq,D)
    pos = jnp.sum(q.astype(jnp.float32) * kpos, axis=-1, keepdims=True)
    if not fold_scale:
        pos = pos * inv                                           # (bt,tq,1)

    if bounded:
        # Normalized-feature fast path: logits bounded => exp safe unshifted.
        s = jnp.sum(jnp.exp(neg), axis=-1, keepdims=True)
        s = s + jnp.exp(jnp.float32(-10.0) * inv)
        o_ref[...] = jnp.log(s) - pos
    else:
        m = jnp.maximum(jnp.max(neg, axis=-1, keepdims=True), pos)
        s = jnp.sum(jnp.exp(neg - m), axis=-1, keepdims=True)
        s = s + jnp.exp(jnp.float32(-10.0) * inv - m)
        o_ref[...] = (m + jnp.log(s)) - pos


def _nce_kernel_w(q_ref, kT_ref, kpos_ref, w_ref, o_ref, *, inv_T, tq,
                  fold_scale, bounded):
    """Weighted NCE row tile.  HBM-bound on streaming w, so the explicit
    diagonal mask (exactly matching the reference -10.0 fill) is kept."""
    inv = jnp.float32(inv_T)
    t = pl.program_id(1)
    r0 = t * tq

    q = q_ref[...]                                   # (bt, tq, D)
    kT = kT_ref[...]                                 # (bt, D,  P)
    if fold_scale:
        q = q.astype(jnp.float32) * inv
    l = jnp.einsum("btd,bdp->btp", q, kT,
                   preferred_element_type=jnp.float32)            # (bt,tq,P)

    w = w_ref[...].astype(jnp.float32)               # streamed in native dtype
    if fold_scale:
        neg = l + w * inv
    else:
        neg = (l + w) * inv

    kpos = kpos_ref[...].astype(jnp.float32)
    pos = jnp.sum(q.astype(jnp.float32) * kpos, axis=-1, keepdims=True)
    if not fold_scale:
        pos = pos * inv

    P = neg.shape[-1]
    row = lax.broadcasted_iota(jnp.int32, (tq, P), 0) + r0
    col = lax.broadcasted_iota(jnp.int32, (tq, P), 1)
    neg = jnp.where((row == col)[None], jnp.float32(-10.0) * inv, neg)

    if bounded:
        s = jnp.exp(pos) + jnp.sum(jnp.exp(neg), axis=-1, keepdims=True)
        o_ref[...] = jnp.log(s) - pos
    else:
        m = jnp.maximum(jnp.max(neg, axis=-1, keepdims=True), pos)
        s = jnp.exp(pos - m) + jnp.sum(jnp.exp(neg - m), axis=-1, keepdims=True)
        o_ref[...] = (m + jnp.log(s)) - pos


# --------------------------------------------------------------------------- #
# Tiling / VMEM heuristics (TPU-generation aware)
# --------------------------------------------------------------------------- #
def _vmem_capacity_bytes():
    try:
        info = pltpu.get_tpu_info()
        cap = getattr(info, "vmem_capacity_bytes", None)
        if cap:
            return int(cap)
    except Exception:
        pass
    return 64 * 1024 * 1024                       # conservative (v7x-sized)


def _choose_tq(P, tile_budget):
    """Row-tile size: divides P, multiple of 8 (or == P), f32 (tq,P) tile fits."""
    if P <= 512 or P * P * 4 <= tile_budget:
        return P
    for tq in (1024, 512, 256, 128, 64, 32, 16, 8):
        if P % tq == 0 and tq * P * 4 <= tile_budget:
            return tq
    for tq in (8, 16, 32, 64, 128, 256, 512):
        if P % tq == 0:
            return tq
    return P


def _choose_bt(B, P, pack_budget):
    """Pack several batch slices per grid step when the per-image work is tiny."""
    if P > 512:
        return 1
    for bt in (8, 4, 2):
        if B % bt == 0 and 3 * bt * P * P * 4 <= pack_budget:
            return bt
    return 1


# --------------------------------------------------------------------------- #
# Wrapper
# --------------------------------------------------------------------------- #
def unbiased_patchnce_loss(feat_q, feat_k, weights=None, *, batch_size,
                           nce_T=0.07,
                           nce_includes_all_negatives_from_minibatch=False,
                           compute_dtype=jnp.bfloat16,
                           assume_bounded_logits=False):
    """Pallas equivalent of UnbiasedPatchNCELoss.forward for the
    vanilla_nce (weights=None) / weighted_nce branches (classes=None).

    `compute_dtype` is the streamed / MXU dtype for q and k; all loss math
    (weights add, masking, temperature, logsumexp) is float32, and `weights`
    (if given) is streamed in its native dtype.  `assume_bounded_logits=True`
    skips the logsumexp max-shift (safe for L2-normalized features)."""
    N, D = feat_q.shape
    B = 1 if nce_includes_all_negatives_from_minibatch else batch_size
    P = N // B
    assert B * P == N, "num_patches must be divisible by batch_dim_for_bmm"

    q = feat_q.astype(compute_dtype).reshape(B, P, D)
    k = feat_k.astype(compute_dtype).reshape(B, P, D)
    kT = jnp.swapaxes(k, 1, 2)                    # (B, D, P) lane-dense RHS

    cap = _vmem_capacity_bytes()
    big_vmem = cap >= (96 << 20)                  # v5e / v6e (128 MiB) vs v7x (64 MiB)
    tile_budget = (8 << 20) if big_vmem else (4 << 20)
    pack_budget = (8 << 20) if big_vmem else (3 << 20)

    tq = _choose_tq(P, tile_budget)
    bt = _choose_bt(B, P, pack_budget)
    grid = (B // bt, P // tq)

    fold_scale = jnp.dtype(compute_dtype) == jnp.dtype(jnp.float32)

    in_specs = [
        pl.BlockSpec((bt, tq, D), lambda b, t: (b, t, 0)),   # q row tile
        pl.BlockSpec((bt, D, P), lambda b, t: (b, 0, 0)),    # k^T resident per batch
        pl.BlockSpec((bt, tq, D), lambda b, t: (b, t, 0)),   # k rows for l_pos
    ]
    operands = [q, kT, k]

    if weights is not None:
        # Stream w in its native dtype: no wrapper astype pass over (B, P, P).
        w = weights.reshape(B, P, P)
        in_specs.append(pl.BlockSpec((bt, tq, P), lambda b, t: (b, t, 0)))
        operands.append(w)
        kernel = functools.partial(_nce_kernel_w, inv_T=1.0 / float(nce_T),
                                   tq=tq, fold_scale=fold_scale,
                                   bounded=assume_bounded_logits)
        w_bytes = jnp.dtype(w.dtype).itemsize
        n_tmp = 5
    else:
        kernel = functools.partial(_nce_kernel, inv_T=1.0 / float(nce_T),
                                   fold_scale=fold_scale,
                                   bounded=assume_bounded_logits)
        w_bytes = 0
        n_tmp = 3

    # Scoped-VMEM: double-buffered blocks + f32 (tq, P) temporaries + headroom.
    cbytes = jnp.dtype(compute_dtype).itemsize
    need = 2 * bt * (tq * D + D * P + tq * D) * cbytes          # q, kT, kpos
    need += 2 * bt * tq * P * w_bytes                           # streamed w
    need += 2 * bt * tq * 4                                     # output blocks
    need += n_tmp * bt * tq * P * 4                             # f32 logit temps
    vmem_limit = int(min(0.85 * cap, max(need + (16 << 20), 32 << 20)))

    out = pl.pallas_call(
        kernel,
        out_shape=jax.ShapeDtypeStruct((B, P, 1), jnp.float32),
        grid_spec=pltpu.PrefetchScalarGridSpec(
            num_scalar_prefetch=0,
            grid=grid,
            in_specs=in_specs,
            out_specs=pl.BlockSpec((bt, tq, 1), lambda b, t: (b, t, 0)),
        ),
        compiler_params=pltpu.CompilerParams(
            dimension_semantics=("parallel", "parallel"),
            vmem_limit_bytes=vmem_limit),
    )(*operands)

    return out.reshape(N)


# --------------------------------------------------------------------------- #
# Pure-JAX reference mirroring the PyTorch code, for validation
# --------------------------------------------------------------------------- #
def _reference_loss(feat_q, feat_k, weights, batch_size, nce_T):
    N, D = feat_q.shape
    B = batch_size
    P = N // B
    l_pos = jnp.sum(feat_q * feat_k, axis=-1).reshape(N, 1)
    q = feat_q.reshape(B, P, D)
    k = feat_k.reshape(B, P, D)
    l_neg = jnp.einsum("bpd,bqd->bpq", q, k, precision=jax.lax.Precision.HIGHEST)
    if weights is not None:
        l_neg = l_neg + weights.reshape(B, P, P)
    eye = jnp.eye(P, dtype=bool)[None]
    l_neg = jnp.where(eye, -10.0, l_neg).reshape(N, P)
    out = jnp.concatenate([l_pos, l_neg], axis=1) / nce_T
    lse = jax.scipy.special.logsumexp(out, axis=1)
    return lse - out[:, 0]


if __name__ == "__main__":
    key = jax.random.PRNGKey(0)
    k1, k2, k3, k4, k5 = jax.random.split(key, 5)

    def l2norm(x):
        return x / jnp.linalg.norm(x, axis=-1, keepdims=True)

    qz = lambda x: x.astype(jnp.bfloat16).astype(jnp.float32)

    # --- Case 1: batch=2, patches_per_image=64, dim=32 (vanilla + weighted) ---
    batch_size, patches, dim = 2, 64, 32
    N = batch_size * patches
    nce_T = 0.07

    feat_q = l2norm(jax.random.normal(k1, (N, dim), dtype=jnp.float32))
    feat_k = l2norm(jax.random.normal(k2, (N, dim), dtype=jnp.float32))
    weights = 0.1 * jax.random.normal(
        k3, (batch_size, patches, patches), dtype=jnp.float32)

    ref_v = _reference_loss(feat_q, feat_k, None, batch_size, nce_T)
    ref_w = _reference_loss(feat_q, feat_k, weights, batch_size, nce_T)

    # float32 compute path vs exact reference
    out_v32 = unbiased_patchnce_loss(feat_q, feat_k, None, batch_size=batch_size,
                                     nce_T=nce_T, compute_dtype=jnp.float32)
    out_w32 = unbiased_patchnce_loss(feat_q, feat_k, weights, batch_size=batch_size,
                                     nce_T=nce_T, compute_dtype=jnp.float32)
    out_v32, out_w32 = jax.block_until_ready((out_v32, out_w32))
    assert out_v32.shape == (N,) and out_w32.shape == (N,)
    assert jnp.allclose(out_v32, ref_v, atol=1e-4, rtol=1e-4)
    assert jnp.allclose(out_w32, ref_w, atol=1e-4, rtol=1e-4)

    # bf16 (default, MXU-native) compute path vs bf16-quantized q/k reference
    # (weights now stay full precision in the kernel: no wrapper astype of w)
    out_vbf = unbiased_patchnce_loss(feat_q, feat_k, None,
                                     batch_size=batch_size, nce_T=nce_T)
    out_wbf = unbiased_patchnce_loss(feat_q, feat_k, weights,
                                     batch_size=batch_size, nce_T=nce_T)
    out_vbf, out_wbf = jax.block_until_ready((out_vbf, out_wbf))
    ref_vq = _reference_loss(qz(feat_q), qz(feat_k), None, batch_size, nce_T)
    ref_wq = _reference_loss(qz(feat_q), qz(feat_k), weights, batch_size, nce_T)
    assert jnp.allclose(out_vbf, ref_vq, atol=2e-3, rtol=2e-3)
    assert jnp.allclose(out_wbf, ref_wq, atol=2e-3, rtol=2e-3)
    assert jnp.allclose(out_vbf, ref_v, atol=0.05, rtol=0.05)

    # bounded-logits fast path (L2-normalized features => safe)
    out_vfast = unbiased_patchnce_loss(feat_q, feat_k, None,
                                       batch_size=batch_size, nce_T=nce_T,
                                       assume_bounded_logits=True)
    out_vfast = jax.block_until_ready(out_vfast)
    assert jnp.allclose(out_vfast, ref_vq, atol=2e-3, rtol=2e-3)

    # --- Case 2: larger P exercises the row-tiled path (TQ < P, K^T resident) ---
    batch_size2, patches2, dim2 = 1, 2048, 32
    N2 = batch_size2 * patches2
    fq2 = l2norm(jax.random.normal(k4, (N2, dim2), dtype=jnp.float32))
    fk2 = l2norm(jax.random.normal(k5, (N2, dim2), dtype=jnp.float32))
    out2 = unbiased_patchnce_loss(fq2, fk2, None, batch_size=batch_size2,
                                  nce_T=nce_T)
    out2 = jax.block_until_ready(out2)
    ref2 = _reference_loss(qz(fq2), qz(fk2), None, batch_size2, nce_T)
    assert out2.shape == (N2,)
    assert jnp.allclose(out2, ref2, atol=2e-3, rtol=2e-3)

    print("KERNEL_OK")
</pallas_src>

<mosaic_0001>
module attributes {stable_mosaic.version = 11 : i64} {
  func.func @_nce_kernel(%arg0: i32, %arg1: i32, %arg2: memref<2x64x32xf32, #tpu.memory_space<vmem>>, %arg3: memref<2x32x64xf32, #tpu.memory_space<vmem>>, %arg4: memref<2x64x32xf32, #tpu.memory_space<vmem>>, %arg5: memref<2x64x1xf32, #tpu.memory_space<vmem>>) attributes {dimension_semantics = [#tpu.dimension_semantics<parallel>, #tpu.dimension_semantics<parallel>], iteration_bounds = array<i64: 1, 1>, scalar_prefetch = 0 : i64, scratch_operands = 0 : i64, tpu.core_type = #tpu.core_type<tc>, window_params = [{transform_indices = @transform_0, window_bounds = array<i64: 2, 64, 32>}, {transform_indices = @transform_1, window_bounds = array<i64: 2, 32, 64>}, {transform_indices = @transform_2, window_bounds = array<i64: 2, 64, 32>}, {transform_indices = @transform_3, window_bounds = array<i64: 2, 64, 1>}]} {
    %c0 = arith.constant 0 : index
    %c0_0 = arith.constant 0 : index
    %c0_1 = arith.constant 0 : index
    %0 = vector.load %arg2[%c0, %c0_0, %c0_1] : memref<2x64x32xf32, #tpu.memory_space<vmem>>, vector<2x64x32xf32>
    %c0_2 = arith.constant 0 : index
    %c0_3 = arith.constant 0 : index
    %c0_4 = arith.constant 0 : index
    %1 = vector.load %arg3[%c0_2, %c0_3, %c0_4] : memref<2x32x64xf32, #tpu.memory_space<vmem>>, vector<2x32x64xf32>
    %cst = arith.constant 14.2857141 : f32
    %2 = vector.broadcast %cst : f32 to vector<2x64x32xf32>
    %3 = arith.mulf %0, %2 : vector<2x64x32xf32>
    "tpu.trace_start"() <{level = 10 : i32, message = "btd,bdp->btp"}> : () -> ()
    %cst_5 = arith.constant dense<0.000000e+00> : vector<2x64x64xf32>
    %4 = tpu.matmul %3, %1, %cst_5 {dimension_numbers = #tpu.dot_dimension_numbers<[2], [1], [1], [2], [0, 0, 0, 1, 1, 2], [0], [0]>} : vector<2x64x32xf32>, vector<2x32x64xf32>, vector<2x64x64xf32> -> vector<2x64x64xf32>
    "tpu.trace_stop"() : () -> ()
    %c0_6 = arith.constant 0 : index
    %c0_7 = arith.constant 0 : index
    %c0_8 = arith.constant 0 : index
    %5 = vector.load %arg4[%c0_6, %c0_7, %c0_8] : memref<2x64x32xf32, #tpu.memory_space<vmem>>, vector<2x64x32xf32>
    %6 = arith.mulf %3, %5 : vector<2x64x32xf32>
    %cst_9 = arith.constant dense<0.000000e+00> : vector<2x64xf32>
    %7 = vector.multi_reduction <add>, %6, %cst_9 [2] : vector<2x64x32xf32> to vector<2x64xf32>
    %8 = vector.shape_cast %7 : vector<2x64xf32> to vector<2x64x1xf32>
    %cst_10 = arith.constant dense<0xFF800000> : vector<2x64xf32>
    %9 = vector.multi_reduction <maximumf>, %4, %cst_10 [2] : vector<2x64x64xf32> to vector<2x64xf32>
    %10 = vector.shape_cast %9 : vector<2x64xf32> to vector<2x64x1xf32>
    %11 = arith.maximumf %10, %8 : vector<2x64x1xf32>
    %12 = vector.broadcast %11 : vector<2x64x1xf32> to vector<2x64x64xf32>
    %13 = arith.subf %4, %12 : vector<2x64x64xf32>
    %14 = math.exp %13 : vector<2x64x64xf32>
    %cst_11 = arith.constant dense<0.000000e+00> : vector<2x64xf32>
    %15 = vector.multi_reduction <add>, %14, %cst_11 [2] : vector<2x64x64xf32> to vector<2x64xf32>
    %16 = vector.shape_cast %15 : vector<2x64xf32> to vector<2x64x1xf32>
    %cst_12 = arith.constant -1.000000e+01 : f32
    %cst_13 = arith.constant 14.2857141 : f32
    %17 = arith.mulf %cst_12, %cst_13 : f32
    %18 = vector.broadcast %17 : f32 to vector<2x64x1xf32>
    %19 = arith.subf %18, %11 : vector<2x64x1xf32>
    %20 = math.exp %19 : vector<2x64x1xf32>
    %21 = arith.addf %16, %20 : vector<2x64x1xf32>
    %22 = math.log %21 : vector<2x64x1xf32>
    %23 = arith.addf %11, %22 : vector<2x64x1xf32>
    %24 = arith.subf %23, %8 : vector<2x64x1xf32>
    %c0_14 = arith.constant 0 : index
    %c0_15 = arith.constant 0 : index
    %c0_16 = arith.constant 0 : index
    %25 = vector.load %arg5[%c0_14, %c0_15, %c0_16] : memref<2x64x1xf32, #tpu.memory_space<vmem>>, vector<2x64x1xf32>
    tpu.vector_store %arg5[%c0_14, %c0_15, %c0_16], %24 {strides = array<i32>} : memref<2x64x1xf32, #tpu.memory_space<vmem>>, vector<2x64x1xf32>,
    return
  }
  func.func @transform_0(%arg0: i32, %arg1: i32) -> (i32, i32, i32) {
    %c0_i32 = arith.constant 0 : i32
    %c0_i32_0 = arith.constant 0 : i32
    return %arg0, %arg1, %c0_i32 : i32, i32, i32
  }
  func.func @transform_1(%arg0: i32, %arg1: i32) -> (i32, i32, i32) {
    %c0_i32 = arith.constant 0 : i32
    %c0_i32_0 = arith.constant 0 : i32
    %c0_i32_1 = arith.constant 0 : i32
    return %arg0, %c0_i32, %c0_i32_0 : i32, i32, i32
  }
  func.func @transform_2(%arg0: i32, %arg1: i32) -> (i32, i32, i32) {
    %c0_i32 = arith.constant 0 : i32
    %c0_i32_0 = arith.constant 0 : i32
    return %arg0, %arg1, %c0_i32 : i32, i32, i32
  }
  func.func @transform_3(%arg0: i32, %arg1: i32) -> (i32, i32, i32) {
    %c0_i32 = arith.constant 0 : i32
    %c0_i32_0 = arith.constant 0 : i32
    return %arg0, %arg1, %c0_i32 : i32, i32, i32
  }
}

</mosaic_0001>

<llo_original>
// kernel: tpu_custom_call.1
$region0: #{tpu_custom_call.1}
  #allocation0 [shape = 'u32[]', space=smem, size = 0x4, offset = 0x4, fixed_abs, tag = 'smem constant byte address 0x4 - core index']
  #allocation1 [shape = 'u32[144,128]{1,0:T(1,128)}', space=vmem, size = 0x12000, scoped, tag = 'internal scratch']
  %s0 = inlined_call_operand.vmem [shape: f32[2,64,32], index: 0, kind: input, shape index: {}]
  %s1 = inlined_call_operand.vmem [shape: f32[2,32,64], index: 1, kind: input, shape index: {}]
  %s2 = inlined_call_operand.vmem [shape: f32[2,64,32], index: 2, kind: input, shape index: {}]
  %s3 = inlined_call_operand.vmem [shape: f32[2,64,1], index: 3, kind: output, shape index: {}]
  %s4 = sld [smem:[#allocation0]]
  $region22: #{tpu_custom_call.1} parent=0
    _
  %s6 = ssub.s32 1, %s4
  %s7 = scalar_select 0, %s6, %s4
  // Predicated region
  $region2: #{tpu_custom_call.1} parent=0 // pred_check
    _
  $region3: #{tpu_custom_call.1} parent=0 // pred_check_branch
    %9 = sbr.rel (0) target = $region5
  $region4: #{tpu_custom_call.1} parent=0 // pred_region
    _
  $region5: #{tpu_custom_call.1} parent=0 // pred_fallthru
    _
  // Predicated region
  $region6: #{tpu_custom_call.1} parent=0 // pred_check
    _
  $region7: #{tpu_custom_call.1} parent=0 // pred_check_branch
    %11 = sbr.rel (0) target = $region9
  $region8: #{tpu_custom_call.1} parent=0 // pred_region
    _
  $region9: #{tpu_custom_call.1} parent=0 // pred_fallthru
    _
  // Predicated region
  $region10: #{tpu_custom_call.1} parent=0 // pred_check
    _
  $region11: #{tpu_custom_call.1} parent=0 // pred_check_branch
    %13 = sbr.rel (0) target = $region13
  $region12: #{tpu_custom_call.1} parent=0 // pred_region
    _
  $region13: #{tpu_custom_call.1} parent=0 // pred_fallthru
    _
  %v14 = vld [vmem:[%s0] sm:$0xff]
  %v15 = vld [vmem:[%s0 + $0x8] sm:$0xff]
  %v16 = vld [vmem:[%s0 + $0x10] sm:$0xff]
  %v17 = vld [vmem:[%s0 + $0x18] sm:$0xff]
  %v18 = vld [vmem:[%s0 + $0x20] sm:$0xff]
  %v19 = vld [vmem:[%s0 + $0x28] sm:$0xff]
  %v20 = vld [vmem:[%s0 + $0x30] sm:$0xff]
  %v21 = vld [vmem:[%s0 + $0x38] sm:$0xff]
  %v22 = vld [vmem:[%s0 + $0x40] sm:$0xff]
  %v23 = vld [vmem:[%s0 + $0x48] sm:$0xff]
  %v24 = vld [vmem:[%s0 + $0x50] sm:$0xff]
  %v25 = vld [vmem:[%s0 + $0x58] sm:$0xff]
  %v26 = vld [vmem:[%s0 + $0x60] sm:$0xff]
  %v27 = vld [vmem:[%s0 + $0x68] sm:$0xff]
  %v28 = vld [vmem:[%s0 + $0x70] sm:$0xff]
  %v29 = vld [vmem:[%s0 + $0x78] sm:$0xff]
  %v30 = vld [vmem:[%s1] sm:$0xff]
  %v31 = vld [vmem:[%s1 + $0x8] sm:$0xff]
  %v32 = vld [vmem:[%s1 + $0x10] sm:$0xff]
  %v33 = vld [vmem:[%s1 + $0x18] sm:$0xff]
  %v34 = vld [vmem:[%s1 + $0x20] sm:$0xff]
  %v35 = vld [vmem:[%s1 + $0x28] sm:$0xff]
  %v36 = vld [vmem:[%s1 + $0x30] sm:$0xff]
  %v37 = vld [vmem:[%s1 + $0x38] sm:$0xff]
  %v38 = vmul.f32 %v14, 14.285714
  %v39 = vmul.f32 %v15, 14.285714
  %v40 = vmul.f32 %v16, 14.285714
  %v41 = vmul.f32 %v17, 14.285714
  %v42 = vmul.f32 %v18, 14.285714
  %v43 = vmul.f32 %v19, 14.285714
  %v44 = vmul.f32 %v20, 14.285714
  %v45 = vmul.f32 %v21, 14.285714
  %v46 = vmul.f32 %v22, 14.285714
  %v47 = vmul.f32 %v23, 14.285714
  %v48 = vmul.f32 %v24, 14.285714
  %v49 = vmul.f32 %v25, 14.285714
  %v50 = vmul.f32 %v26, 14.285714
  %v51 = vmul.f32 %v27, 14.285714
  %v52 = vmul.f32 %v28, 14.285714
  %v53 = vmul.f32 %v29, 14.285714
  %vm54 = vcmask 261120
  %v56 = vsel %vm54, %v38, 0
  %v59 = vsel %vm54, %v39, 0
  %v62 = vsel %vm54, %v40, 0
  %v65 = vsel %vm54, %v41, 0
  %v68 = vsel %vm54, %v42, 0
  %v71 = vsel %vm54, %v43, 0
  %v74 = vsel %vm54, %v44, 0
  %v77 = vsel %vm54, %v45, 0
  %79 = vmatprep.subr.mxu0 0.0
  %80 = vmatpush1.msra.mxu0 %v30
  %81 = vmatprep.subr.mxu0 0.0
  %82 = vmatpush1.msra.mxu0 %v31
  %83 = vmatprep.subr.mxu0 0.0
  %84 = vmatpush1.msra.mxu0 %v32
  %85 = vmatprep.subr.mxu0 0.0
  %86 = vmatpush1.msra.mxu0 %v33
  %87 = vmatprep.subr.mxu0 0.0
  %88 = vmatpush1.msra.mxu0 0.0
  %89 = vmatprep.subr.mxu0 0.0
  %90 = vmatpush1.msra.mxu0 0.0
  %91 = vmatprep.subr.mxu0 0.0
  %92 = vmatpush1.msra.mxu0 0.0
  %93 = vmatprep.subr.mxu0 0.0
  %94 = vmatpush1.msra.mxu0 0.0
  %95 = vmatprep.subr.mxu0 0.0
  %96 = vmatpush1.msra.mxu0 0.0
  %97 = vmatprep.subr.mxu0 0.0
  %98 = vmatpush1.msra.mxu0 0.0
  %99 = vmatprep.subr.mxu0 0.0
  %100 = vmatpush1.msra.mxu0 0.0
  %101 = vmatprep.subr.mxu0 0.0
  %102 = vmatpush1.msra.mxu0 0.0
  %103 = vmatprep.subr.mxu0 0.0
  %104 = vmatpush1.msra.mxu0 0.0
  %105 = vmatprep.subr.mxu0 0.0
  %106 = vmatpush1.msra.mxu0 0.0
  %107 = vmatprep.subr.mxu0 0.0
  %108 = vmatpush1.msra.mxu0 0.0
  %109 = vmatprep.subr.mxu0 0.0
  %110 = vmatpush1.msra.mxu0 0.0
  %111 = vmatprep.subr.mxu0 0.0
  %112 = vmatpush1.msra.mxu0 0.0
  %113 = vmatprep.subr.mxu0 0.0
  %114 = vmatpush1.msra.mxu0 0.0
  %115 = vmatprep.subr.mxu0 0.0
  %116 = vmatpush1.msra.mxu0 0.0
  %117 = vmatprep.subr.mxu0 0.0
  %118 = vmatpush1.msra.mxu0 0.0
  %119 = vmatprep.subr.mxu0 0.0
  %120 = vmatpush1.msra.mxu0 0.0
  %121 = vmatprep.subr.mxu0 0.0
  %122 = vmatpush1.msra.mxu0 0.0
  %123 = vmatprep.subr.mxu0 0.0
  %124 = vmatpush1.msra.mxu0 0.0
  %125 = vmatprep.subr.mxu0 0.0
  %126 = vmatpush1.msra.mxu0 0.0
  %127 = vmatprep.subr.mxu0 0.0
  %128 = vmatpush1.msra.mxu0 0.0
  %129 = vmatprep.subr.mxu0 0.0
  %130 = vmatpush1.msra.mxu0 0.0
  %131 = vmatprep.subr.mxu0 0.0
  %132 = vmatpush1.msra.mxu0 0.0
  %133 = vmatprep.subr.mxu0 0.0
  %134 = vmatpush1.msra.mxu0 0.0
  %135 = vmatprep.subr.mxu0 0.0
  %136 = vmatpush1.msra.mxu0 0.0
  %137 = vmatprep.subr.mxu0 0.0
  %138 = vmatpush1.msra.mxu0 0.0
  %139 = vmatprep.subr.mxu0 0.0
  %140 = vmatpush1.msra.mxu0 0.0
  %141 = vmatprep.subr.mxu0 0.0
  %142 = vmatpush1.msra.mxu0 0.0
  %143 = vmatprep.mubr.f32.mxu0 0.0
  %144 = vmatmul.mubr.f32.gmra.mrb[0].mxu0 %v56
  %v145 = vpop.f32.mrb[0].mxu0
  %v146 = vadd.f32 0.0, %v145
  %v147 = vpop.f32.mrb[0].mxu0
  %148 = vmatprep.mubr.f32.mxu0 0.0
  %149 = vmatmul.mubr.f32.gmra.mrb[0].mxu0 %v59
  %v150 = vpop.f32.mrb[0].mxu0
  %v151 = vadd.f32 0.0, %v150
  %v152 = vpop.f32.mrb[0].mxu0
  %153 = vmatprep.mubr.f32.mxu0 0.0
  %154 = vmatmul.mubr.f32.gmra.mrb[0].mxu0 %v62
  %v155 = vpop.f32.mrb[0].mxu0
  %v156 = vadd.f32 0.0, %v155
  %v157 = vpop.f32.mrb[0].mxu0
  %158 = vmatprep.mubr.f32.mxu0 0.0
  %159 = vmatmul.mubr.f32.gmra.mrb[0].mxu0 %v65
  %v160 = vpop.f32.mrb[0].mxu0
  %v161 = vadd.f32 0.0, %v160
  %v162 = vpop.f32.mrb[0].mxu0
  %163 = vmatprep.mubr.f32.mxu0 0.0
  %164 = vmatmul.mubr.f32.gmra.mrb[0].mxu0 %v68
  %v165 = vpop.f32.mrb[0].mxu0
  %v166 = vadd.f32 0.0, %v165
  %v167 = vpop.f32.mrb[0].mxu0
  %168 = vmatprep.mubr.f32.mxu0 0.0
  %169 = vmatmul.mubr.f32.gmra.mrb[0].mxu0 %v71
  %v170 = vpop.f32.mrb[0].mxu0
  %v171 = vadd.f32 0.0, %v170
  %v172 = vpop.f32.mrb[0].mxu0
  %173 = vmatprep.mubr.f32.mxu0 0.0
  %174 = vmatmul.mubr.f32.gmra.mrb[0].mxu0 %v74
  %v175 = vpop.f32.mrb[0].mxu0
  %v176 = vadd.f32 0.0, %v175
  %v177 = vpop.f32.mrb[0].mxu0
  %178 = vmatprep.mubr.f32.mxu0 0.0
  %179 = vmatmul.mubr.f32.gmra.mrb[0].mxu0 %v77
  %v180 = vpop.f32.mrb[0].mxu0
  %v181 = vadd.f32 0.0, %v180
  %v182 = vpop.f32.mrb[0].mxu0
  %183 = vdwg.mxu0
  %v185 = vsel %vm54, %v46, 0
  %v188 = vsel %vm54, %v47, 0
  %v191 = vsel %vm54, %v48, 0
  %v194 = vsel %vm54, %v49, 0
  %v197 = vsel %vm54, %v50, 0
  %v200 = vsel %vm54, %v51, 0
  %v203 = vsel %vm54, %v52, 0
  %v206 = vsel %vm54, %v53, 0
  %208 = vmatprep.subr.mxu0 0.0
  %209 = vmatpush1.msra.mxu0 %v34
  %210 = vmatprep.subr.mxu0 0.0
  %211 = vmatpush1.msra.mxu0 %v35
  %212 = vmatprep.subr.mxu0 0.0
  %213 = vmatpush1.msra.mxu0 %v36
  %214 = vmatprep.subr.mxu0 0.0
  %215 = vmatpush1.msra.mxu0 %v37
  %216 = vmatprep.subr.mxu0 0.0
  %217 = vmatpush1.msra.mxu0 0.0
  %218 = vmatprep.subr.mxu0 0.0
  %219 = vmatpush1.msra.mxu0 0.0
  %220 = vmatprep.subr.mxu0 0.0
  %221 = vmatpush1.msra.mxu0 0.0
  %222 = vmatprep.subr.mxu0 0.0
  %223 = vmatpush1.msra.mxu0 0.0
  %224 = vmatprep.subr.mxu0 0.0
  %225 = vmatpush1.msra.mxu0 0.0
  %226 = vmatprep.subr.mxu0 0.0
  %227 = vmatpush1.msra.mxu0 0.0
  %228 = vmatprep.subr.mxu0 0.0
  %229 = vmatpush1.msra.mxu0 0.0
  %230 = vmatprep.subr.mxu0 0.0
  %231 = vmatpush1.msra.mxu0 0.0
  %232 = vmatprep.subr.mxu0 0.0
  %233 = vmatpush1.msra.mxu0 0.0
  %234 = vmatprep.subr.mxu0 0.0
  %235 = vmatpush1.msra.mxu0 0.0
  %236 = vmatprep.subr.mxu0 0.0
  %237 = vmatpush1.msra.mxu0 0.0
  %238 = vmatprep.subr.mxu0 0.0
  %239 = vmatpush1.msra.mxu0 0.0
  %240 = vmatprep.subr.mxu0 0.0
  %241 = vmatpush1.msra.mxu0 0.0
  %242 = vmatprep.subr.mxu0 0.0
  %243 = vmatpush1.msra.mxu0 0.0
  %244 = vmatprep.subr.mxu0 0.0
  %245 = vmatpush1.msra.mxu0 0.0
  %246 = vmatprep.subr.mxu0 0.0
  %247 = vmatpush1.msra.mxu0 0.0
  %248 = vmatprep.subr.mxu0 0.0
  %249 = vmatpush1.msra.mxu0 0.0
  %250 = vmatprep.subr.mxu0 0.0
  %251 = vmatpush1.msra.mxu0 0.0
  %252 = vmatprep.subr.mxu0 0.0
  %253 = vmatpush1.msra.mxu0 0.0
  %254 = vmatprep.subr.mxu0 0.0
  %255 = vmatpush1.msra.mxu0 0.0
  %256 = vmatprep.subr.mxu0 0.0
  %257 = vmatpush1.msra.mxu0 0.0
  %258 = vmatprep.subr.mxu0 0.0
  %259 = vmatpush1.msra.mxu0 0.0
  %260 = vmatprep.subr.mxu0 0.0
  %261 = vmatpush1.msra.mxu0 0.0
  %262 = vmatprep.subr.mxu0 0.0
  %263 = vmatpush1.msra.mxu0 0.0
  %264 = vmatprep.subr.mxu0 0.0
  %265 = vmatpush1.msra.mxu0 0.0
  %266 = vmatprep.subr.mxu0 0.0
  %267 = vmatpush1.msra.mxu0 0.0
  %268 = vmatprep.subr.mxu0 0.0
  %269 = vmatpush1.msra.mxu0 0.0
  %270 = vmatprep.subr.mxu0 0.0
  %271 = vmatpush1.msra.mxu0 0.0
  %272 = vmatprep.mubr.f32.mxu0 0.0
  %273 = vmatmul.mubr.f32.gmra.mrb[0].mxu0 %v185
  %v274 = vpop.f32.mrb[0].mxu0
  %v275 = vadd.f32 0.0, %v274
  %v276 = vpop.f32.mrb[0].mxu0
  %277 = vmatprep.mubr.f32.mxu0 0.0
  %278 = vmatmul.mubr.f32.gmra.mrb[0].mxu0 %v188
  %v279 = vpop.f32.mrb[0].mxu0
  %v280 = vadd.f32 0.0, %v279
  %v281 = vpop.f32.mrb[0].mxu0
  %282 = vmatprep.mubr.f32.mxu0 0.0
  %283 = vmatmul.mubr.f32.gmra.mrb[0].mxu0 %v191
  %v284 = vpop.f32.mrb[0].mxu0
  %v285 = vadd.f32 0.0, %v284
  %v286 = vpop.f32.mrb[0].mxu0
  %287 = vmatprep.mubr.f32.mxu0 0.0
  %288 = vmatmul.mubr.f32.gmra.mrb[0].mxu0 %v194
  %v289 = vpop.f32.mrb[0].mxu0
  %v290 = vadd.f32 0.0, %v289
  %v291 = vpop.f32.mrb[0].mxu0
  %292 = vmatprep.mubr.f32.mxu0 0.0
  %293 = vmatmul.mubr.f32.gmra.mrb[0].mxu0 %v197
  %v294 = vpop.f32.mrb[0].mxu0
  %v295 = vadd.f32 0.0, %v294
  %v296 = vpop.f32.mrb[0].mxu0
  %297 = vmatprep.mubr.f32.mxu0 0.0
  %298 = vmatmul.mubr.f32.gmra.mrb[0].mxu0 %v200
  %v299 = vpop.f32.mrb[0].mxu0
  %v300 = vadd.f32 0.0, %v299
  %v301 = vpop.f32.mrb[0].mxu0
  %302 = vmatprep.mubr.f32.mxu0 0.0
  %303 = vmatmul.mubr.f32.gmra.mrb[0].mxu0 %v203
  %v304 = vpop.f32.mrb[0].mxu0
  %v305 = vadd.f32 0.0, %v304
  %v306 = vpop.f32.mrb[0].mxu0
  %307 = vmatprep.mubr.f32.mxu0 0.0
  %308 = vmatmul.mubr.f32.gmra.mrb[0].mxu0 %v206
  %v309 = vpop.f32.mrb[0].mxu0
  %v310 = vadd.f32 0.0, %v309
  %v311 = vpop.f32.mrb[0].mxu0
  %312 = vdwg.mxu0
  %v313 = vld [vmem:[%s2] sm:$0xff]
  %v314 = vld [vmem:[%s2 + $0x8] sm:$0xff]
  %v315 = vld [vmem:[%s2 + $0x10] sm:$0xff]
  %v316 = vld [vmem:[%s2 + $0x18] sm:$0xff]
  %v317 = vld [vmem:[%s2 + $0x20] sm:$0xff]
  %v318 = vld [vmem:[%s2 + $0x28] sm:$0xff]
  %v319 = vld [vmem:[%s2 + $0x30] sm:$0xff]
  %v320 = vld [vmem:[%s2 + $0x38] sm:$0xff]
  %v321 = vld [vmem:[%s2 + $0x40] sm:$0xff]
  %v322 = vld [vmem:[%s2 + $0x48] sm:$0xff]
  %v323 = vld [vmem:[%s2 + $0x50] sm:$0xff]
  %v324 = vld [vmem:[%s2 + $0x58] sm:$0xff]
  %v325 = vld [vmem:[%s2 + $0x60] sm:$0xff]
  %v326 = vld [vmem:[%s2 + $0x68] sm:$0xff]
  %v327 = vld [vmem:[%s2 + $0x70] sm:$0xff]
  %v328 = vld [vmem:[%s2 + $0x78] sm:$0xff]
  %v329 = vmul.f32 %v38, %v313
  %v330 = vmul.f32 %v39, %v314
  %v331 = vmul.f32 %v40, %v315
  %v332 = vmul.f32 %v41, %v316
  %v333 = vmul.f32 %v42, %v317
  %v334 = vmul.f32 %v43, %v318
  %v335 = vmul.f32 %v44, %v319
  %v336 = vmul.f32 %v45, %v320
  %v337 = vmul.f32 %v46, %v321
  %v338 = vmul.f32 %v47, %v322
  %v339 = vmul.f32 %v48, %v323
  %v340 = vmul.f32 %v49, %v324
  %v341 = vmul.f32 %v50, %v325
  %v342 = vmul.f32 %v51, %v326
  %v343 = vmul.f32 %v52, %v327
  %v344 = vmul.f32 %v53, %v328
  %v345 = vsel %vm54, %v329, 0.0
  %346 = vadd.xlane.f32.xlu0 %v345
  %v347 = vpop.xlane.xlu0 %346
  %v348 = vsel %vm54, %v330, 0.0
  %349 = vadd.xlane.f32.xlu0 %v348
  %v350 = vpop.xlane.xlu0 %349
  %v351 = vsel %vm54, %v331, 0.0
  %352 = vadd.xlane.f32.xlu0 %v351
  %v353 = vpop.xlane.xlu0 %352
  %v354 = vsel %vm54, %v332, 0.0
  %355 = vadd.xlane.f32.xlu0 %v354
  %v356 = vpop.xlane.xlu0 %355
  %v357 = vsel %vm54, %v333, 0.0
  %358 = vadd.xlane.f32.xlu0 %v357
  %v359 = vpop.xlane.xlu0 %358
  %v360 = vsel %vm54, %v334, 0.0
  %361 = vadd.xlane.f32.xlu0 %v360
  %v362 = vpop.xlane.xlu0 %361
  %v363 = vsel %vm54, %v335, 0.0
  %364 = vadd.xlane.f32.xlu0 %v363
  %v365 = vpop.xlane.xlu0 %364
  %v366 = vsel %vm54, %v336, 0.0
  %367 = vadd.xlane.f32.xlu0 %v366
  %v368 = vpop.xlane.xlu0 %367
  %v369 = vsel %vm54, %v337, 0.0
  %370 = vadd.xlane.f32.xlu0 %v369
  %v371 = vpop.xlane.xlu0 %370
  %v372 = vsel %vm54, %v338, 0.0
  %373 = vadd.xlane.f32.xlu0 %v372
  %v374 = vpop.xlane.xlu0 %373
  %v375 = vsel %vm54, %v339, 0.0
  %376 = vadd.xlane.f32.xlu0 %v375
  %v377 = vpop.xlane.xlu0 %376
  %v378 = vsel %vm54, %v340, 0.0
  %379 = vadd.xlane.f32.xlu0 %v378
  %v380 = vpop.xlane.xlu0 %379
  %v381 = vsel %vm54, %v341, 0.0
  %382 = vadd.xlane.f32.xlu0 %v381
  %v383 = vpop.xlane.xlu0 %382
  %v384 = vsel %vm54, %v342, 0.0
  %385 = vadd.xlane.f32.xlu0 %v384
  %v386 = vpop.xlane.xlu0 %385
  %v387 = vsel %vm54, %v343, 0.0
  %388 = vadd.xlane.f32.xlu0 %v387
  %v389 = vpop.xlane.xlu0 %388
  %v390 = vsel %vm54, %v344, 0.0
  %391 = vadd.xlane.f32.xlu0 %v390
  %v392 = vpop.xlane.xlu0 %391
  %vm393 = vcmask 523264
  %v394 = vsel %vm393, %v146, -inf
  %395 = vmax.xlane.f32.xlu0 %v394
  %v396 = vpop.xlane.xlu0 %395
  %v397 = vsel %vm393, %v151, -inf
  %398 = vmax.xlane.f32.xlu0 %v397
  %v399 = vpop.xlane.xlu0 %398
  %v400 = vsel %vm393, %v156, -inf
  %401 = vmax.xlane.f32.xlu0 %v400
  %v402 = vpop.xlane.xlu0 %401
  %v403 = vsel %vm393, %v161, -inf
  %404 = vmax.xlane.f32.xlu0 %v403
  %v405 = vpop.xlane.xlu0 %404
  %v406 = vsel %vm393, %v166, -inf
  %407 = vmax.xlane.f32.xlu0 %v406
  %v408 = vpop.xlane.xlu0 %407
  %v409 = vsel %vm393, %v171, -inf
  %410 = vmax.xlane.f32.xlu0 %v409
  %v411 = vpop.xlane.xlu0 %410
  %v412 = vsel %vm393, %v176, -inf
  %413 = vmax.xlane.f32.xlu0 %v412
  %v414 = vpop.xlane.xlu0 %413
  %v415 = vsel %vm393, %v181, -inf
  %416 = vmax.xlane.f32.xlu0 %v415
  %v417 = vpop.xlane.xlu0 %416
  %v418 = vsel %vm393, %v275, -inf
  %419 = vmax.xlane.f32.xlu0 %v418
  %v420 = vpop.xlane.xlu0 %419
  %v421 = vsel %vm393, %v280, -inf
  %422 = vmax.xlane.f32.xlu0 %v421
  %v423 = vpop.xlane.xlu0 %422
  %v424 = vsel %vm393, %v285, -inf
  %425 = vmax.xlane.f32.xlu0 %v424
  %v426 = vpop.xlane.xlu0 %425
  %v427 = vsel %vm393, %v290, -inf
  %428 = vmax.xlane.f32.xlu0 %v427
  %v429 = vpop.xlane.xlu0 %428
  %v430 = vsel %vm393, %v295, -inf
  %431 = vmax.xlane.f32.xlu0 %v430
  %v432 = vpop.xlane.xlu0 %431
  %v433 = vsel %vm393, %v300, -inf
  %434 = vmax.xlane.f32.xlu0 %v433
  %v435 = vpop.xlane.xlu0 %434
  %v436 = vsel %vm393, %v305, -inf
  %437 = vmax.xlane.f32.xlu0 %v436
  %v438 = vpop.xlane.xlu0 %437
  %v439 = vsel %vm393, %v310, -inf
  %440 = vmax.xlane.f32.xlu0 %v439
  %v441 = vpop.xlane.xlu0 %440
  %v442 = vmax.f32 %v396, %v347
  %v443 = vmax.f32 %v399, %v350
  %v444 = vmax.f32 %v402, %v353
  %v445 = vmax.f32 %v405, %v356
  %v446 = vmax.f32 %v408, %v359
  %v447 = vmax.f32 %v411, %v362
  %v448 = vmax.f32 %v414, %v365
  %v449 = vmax.f32 %v417, %v368
  %v450 = vmax.f32 %v420, %v371
  %v451 = vmax.f32 %v423, %v374
  %v452 = vmax.f32 %v426, %v377
  %v453 = vmax.f32 %v429, %v380
  %v454 = vmax.f32 %v432, %v383
  %v455 = vmax.f32 %v435, %v386
  %v456 = vmax.f32 %v438, %v389
  %v457 = vmax.f32 %v441, %v392
  %v458 = vsub.f32 %v146, %v442
  %v459 = vsub.f32 %v151, %v443
  %v460 = vsub.f32 %v156, %v444
  %v461 = vsub.f32 %v161, %v445
  %v462 = vsub.f32 %v166, %v446
  %v463 = vsub.f32 %v171, %v447
  %v464 = vsub.f32 %v176, %v448
  %v465 = vsub.f32 %v181, %v449
  %v466 = vsub.f32 %v275, %v450
  %v467 = vsub.f32 %v280, %v451
  %v468 = vsub.f32 %v285, %v452
  %v469 = vsub.f32 %v290, %v453
  %v470 = vsub.f32 %v295, %v454
  %v471 = vsub.f32 %v300, %v455
  %v472 = vsub.f32 %v305, %v456
  %v473 = vsub.f32 %v310, %v457
  %v474 = vmul.f32 %v458, 1.442695
  %v475 = vpow.pop %v474
  %v476 = vmul.f32 %v459, 1.442695
  %v477 = vpow.pop %v476
  %v478 = vmul.f32 %v460, 1.442695
  %v479 = vpow.pop %v478
  %v480 = vmul.f32 %v461, 1.442695
  %v481 = vpow.pop %v480
  %v482 = vmul.f32 %v462, 1.442695
  %v483 = vpow.pop %v482
  %v484 = vmul.f32 %v463, 1.442695
  %v485 = vpow.pop %v484
  %v486 = vmul.f32 %v464, 1.442695
  %v487 = vpow.pop %v486
  %v488 = vmul.f32 %v465, 1.442695
  %v489 = vpow.pop %v488
  %v490 = vmul.f32 %v466, 1.442695
  %v491 = vpow.pop %v490
  %v492 = vmul.f32 %v467, 1.442695
  %v493 = vpow.pop %v492
  %v494 = vmul.f32 %v468, 1.442695
  %v495 = vpow.pop %v494
  %v496 = vmul.f32 %v469, 1.442695
  %v497 = vpow.pop %v496
  %v498 = vmul.f32 %v470, 1.442695
  %v499 = vpow.pop %v498
  %v500 = vmul.f32 %v471, 1.442695
  %v501 = vpow.pop %v500
  %v502 = vmul.f32 %v472, 1.442695
  %v503 = vpow.pop %v502
  %v504 = vmul.f32 %v473, 1.442695
  %v505 = vpow.pop %v504
  %v506 = vsel %vm393, %v475, 0.0
  %507 = vadd.xlane.f32.xlu0 %v506
  %v508 = vpop.xlane.xlu0 %507
  %v509 = vsel %vm393, %v477, 0.0
  %510 = vadd.xlane.f32.xlu0 %v509
  %v511 = vpop.xlane.xlu0 %510
  %v512 = vsel %vm393, %v479, 0.0
  %513 = vadd.xlane.f32.xlu0 %v512
  %v514 = vpop.xlane.xlu0 %513
  %v515 = vsel %vm393, %v481, 0.0
  %516 = vadd.xlane.f32.xlu0 %v515
  %v517 = vpop.xlane.xlu0 %516
  %v518 = vsel %vm393, %v483, 0.0
  %519 = vadd.xlane.f32.xlu0 %v518
  %v520 = vpop.xlane.xlu0 %519
  %v521 = vsel %vm393, %v485, 0.0
  %522 = vadd.xlane.f32.xlu0 %v521
  %v523 = vpop.xlane.xlu0 %522
  %v524 = vsel %vm393, %v487, 0.0
  %525 = vadd.xlane.f32.xlu0 %v524
  %v526 = vpop.xlane.xlu0 %525
  %v527 = vsel %vm393, %v489, 0.0
  %528 = vadd.xlane.f32.xlu0 %v527
  %v529 = vpop.xlane.xlu0 %528
  %v530 = vsel %vm393, %v491, 0.0
  %531 = vadd.xlane.f32.xlu0 %v530
  %v532 = vpop.xlane.xlu0 %531
  %v533 = vsel %vm393, %v493, 0.0
  %534 = vadd.xlane.f32.xlu0 %v533
  %v535 = vpop.xlane.xlu0 %534
  %v536 = vsel %vm393, %v495, 0.0
  %537 = vadd.xlane.f32.xlu0 %v536
  %v538 = vpop.xlane.xlu0 %537
  %v539 = vsel %vm393, %v497, 0.0
  %540 = vadd.xlane.f32.xlu0 %v539
  %v541 = vpop.xlane.xlu0 %540
  %v542 = vsel %vm393, %v499, 0.0
  %543 = vadd.xlane.f32.xlu0 %v542
  %v544 = vpop.xlane.xlu0 %543
  %v545 = vsel %vm393, %v501, 0.0
  %546 = vadd.xlane.f32.xlu0 %v545
  %v547 = vpop.xlane.xlu0 %546
  %v548 = vsel %vm393, %v503, 0.0
  %549 = vadd.xlane.f32.xlu0 %v548
  %v550 = vpop.xlane.xlu0 %549
  %v551 = vsel %vm393, %v505, 0.0
  %552 = vadd.xlane.f32.xlu0 %v551
  %v553 = vpop.xlane.xlu0 %552
  %v554 = vsub.f32 -142.85715, %v442
  %v555 = vsub.f32 -142.85715, %v443
  %v556 = vsub.f32 -142.85715, %v444
  %v557 = vsub.f32 -142.85715, %v445
  %v558 = vsub.f32 -142.85715, %v446
  %v559 = vsub.f32 -142.85715, %v447
  %v560 = vsub.f32 -142.85715, %v448
  %v561 = vsub.f32 -142.85715, %v449
  %v562 = vsub.f32 -142.85715, %v450
  %v563 = vsub.f32 -142.85715, %v451
  %v564 = vsub.f32 -142.85715, %v452
  %v565 = vsub.f32 -142.85715, %v453
  %v566 = vsub.f32 -142.85715, %v454
  %v567 = vsub.f32 -142.85715, %v455
  %v568 = vsub.f32 -142.85715, %v456
  %v569 = vsub.f32 -142.85715, %v457
  %v570 = vmul.f32 %v554, 1.442695
  %v571 = vpow.pop %v570
  %v572 = vmul.f32 %v555, 1.442695
  %v573 = vpow.pop %v572
  %v574 = vmul.f32 %v556, 1.442695
  %v575 = vpow.pop %v574
  %v576 = vmul.f32 %v557, 1.442695
  %v577 = vpow.pop %v576
  %v578 = vmul.f32 %v558, 1.442695
  %v579 = vpow.pop %v578
  %v580 = vmul.f32 %v559, 1.442695
  %v581 = vpow.pop %v580
  %v582 = vmul.f32 %v560, 1.442695
  %v583 = vpow.pop %v582
  %v584 = vmul.f32 %v561, 1.442695
  %v585 = vpow.pop %v584
  %v586 = vmul.f32 %v562, 1.442695
  %v587 = vpow.pop %v586
  %v588 = vmul.f32 %v563, 1.442695
  %v589 = vpow.pop %v588
  %v590 = vmul.f32 %v564, 1.442695
  %v591 = vpow.pop %v590
  %v592 = vmul.f32 %v565, 1.442695
  %v593 = vpow.pop %v592
  %v594 = vmul.f32 %v566, 1.442695
  %v595 = vpow.pop %v594
  %v596 = vmul.f32 %v567, 1.442695
  %v597 = vpow.pop %v596
  %v598 = vmul.f32 %v568, 1.442695
  %v599 = vpow.pop %v598
  %v600 = vmul.f32 %v569, 1.442695
  %v601 = vpow.pop %v600
  %v602 = vadd.f32 %v508, %v571
  %v603 = vadd.f32 %v511, %v573
  %v604 = vadd.f32 %v514, %v575
  %v605 = vadd.f32 %v517, %v577
  %v606 = vadd.f32 %v520, %v579
  %v607 = vadd.f32 %v523, %v581
  %v608 = vadd.f32 %v526, %v583
  %v609 = vadd.f32 %v529, %v585
  %v610 = vadd.f32 %v532, %v587
  %v611 = vadd.f32 %v535, %v589
  %v612 = vadd.f32 %v538, %v591
  %v613 = vadd.f32 %v541, %v593
  %v614 = vadd.f32 %v544, %v595
  %v615 = vadd.f32 %v547, %v597
  %v616 = vadd.f32 %v550, %v599
  %v617 = vadd.f32 %v553, %v601
  %v618 = vlog2.pop %v602
  %v619 = vmul.f32 %v618, 0.6931472
  %v620 = vlog2.pop %v603
  %v621 = vmul.f32 %v620, 0.6931472
  %v622 = vlog2.pop %v604
  %v623 = vmul.f32 %v622, 0.6931472
  %v624 = vlog2.pop %v605
  %v625 = vmul.f32 %v624, 0.6931472
  %v626 = vlog2.pop %v606
  %v627 = vmul.f32 %v626, 0.6931472
  %v628 = vlog2.pop %v607
  %v629 = vmul.f32 %v628, 0.6931472
  %v630 = vlog2.pop %v608
  %v631 = vmul.f32 %v630, 0.6931472
  %v632 = vlog2.pop %v609
  %v633 = vmul.f32 %v632, 0.6931472
  %v634 = vlog2.pop %v610
  %v635 = vmul.f32 %v634, 0.6931472
  %v636 = vlog2.pop %v611
  %v637 = vmul.f32 %v636, 0.6931472
  %v638 = vlog2.pop %v612
  %v639 = vmul.f32 %v638, 0.6931472
  %v640 = vlog2.pop %v613
  %v641 = vmul.f32 %v640, 0.6931472
  %v642 = vlog2.pop %v614
  %v643 = vmul.f32 %v642, 0.6931472
  %v644 = vlog2.pop %v615
  %v645 = vmul.f32 %v644, 0.6931472
  %v646 = vlog2.pop %v616
  %v647 = vmul.f32 %v646, 0.6931472
  %v648 = vlog2.pop %v617
  %v649 = vmul.f32 %v648, 0.6931472
  %v650 = vadd.f32 %v442, %v619
  %v651 = vadd.f32 %v443, %v621
  %v652 = vadd.f32 %v444, %v623
  %v653 = vadd.f32 %v445, %v625
  %v654 = vadd.f32 %v446, %v627
  %v655 = vadd.f32 %v447, %v629
  %v656 = vadd.f32 %v448, %v631
  %v657 = vadd.f32 %v449, %v633
  %v658 = vadd.f32 %v450, %v635
  %v659 = vadd.f32 %v451, %v637
  %v660 = vadd.f32 %v452, %v639
  %v661 = vadd.f32 %v453, %v641
  %v662 = vadd.f32 %v454, %v643
  %v663 = vadd.f32 %v455, %v645
  %v664 = vadd.f32 %v456, %v647
  %v665 = vadd.f32 %v457, %v649
  %v666 = vsub.f32 %v650, %v347
  %v667 = vsub.f32 %v651, %v350
  %v668 = vsub.f32 %v652, %v353
  %v669 = vsub.f32 %v653, %v356
  %v670 = vsub.f32 %v654, %v359
  %v671 = vsub.f32 %v655, %v362
  %v672 = vsub.f32 %v656, %v365
  %v673 = vsub.f32 %v657, %v368
  %v674 = vsub.f32 %v658, %v371
  %v675 = vsub.f32 %v659, %v374
  %v676 = vsub.f32 %v660, %v377
  %v677 = vsub.f32 %v661, %v380
  %v678 = vsub.f32 %v662, %v383
  %v679 = vsub.f32 %v663, %v386
  %v680 = vsub.f32 %v664, %v389
  %v681 = vsub.f32 %v665, %v392
  %vm682 = vcmask 7168
  %683 = vst.msk [vmem:[%s3] sm:$0xff] %vm682, %v666
  %684 = vst.msk [vmem:[%s3 + $0x8] sm:$0xff] %vm682, %v667
  %685 = vst.msk [vmem:[%s3 + $0x10] sm:$0xff] %vm682, %v668
  %686 = vst.msk [vmem:[%s3 + $0x18] sm:$0xff] %vm682, %v669
  %687 = vst.msk [vmem:[%s3 + $0x20] sm:$0xff] %vm682, %v670
  %688 = vst.msk [vmem:[%s3 + $0x28] sm:$0xff] %vm682, %v671
  %689 = vst.msk [vmem:[%s3 + $0x30] sm:$0xff] %vm682, %v672
  %690 = vst.msk [vmem:[%s3 + $0x38] sm:$0xff] %vm682, %v673
  %691 = vst.msk [vmem:[%s3 + $0x40] sm:$0xff] %vm682, %v674
  %692 = vst.msk [vmem:[%s3 + $0x48] sm:$0xff] %vm682, %v675
  %693 = vst.msk [vmem:[%s3 + $0x50] sm:$0xff] %vm682, %v676
  %694 = vst.msk [vmem:[%s3 + $0x58] sm:$0xff] %vm682, %v677
  %695 = vst.msk [vmem:[%s3 + $0x60] sm:$0xff] %vm682, %v678
  %696 = vst.msk [vmem:[%s3 + $0x68] sm:$0xff] %vm682, %v679
  %697 = vst.msk [vmem:[%s3 + $0x70] sm:$0xff] %vm682, %v680
  %698 = vst.msk [vmem:[%s3 + $0x78] sm:$0xff] %vm682, %v681
  // Predicated region
  $region14: #{tpu_custom_call.1} parent=0 // pred_check
    _
  $region15: #{tpu_custom_call.1} parent=0 // pred_check_branch
    %700 = sbr.rel (0) target = $region17
  $region16: #{tpu_custom_call.1} parent=0 // pred_region
    _
  $region17: #{tpu_custom_call.1} parent=0 // pred_fallthru
    _
  // Predicated region
  $region18: #{tpu_custom_call.1} parent=0 // pred_check
    _
  $region19: #{tpu_custom_call.1} parent=0 // pred_check_branch
    %702 = sbr.rel (0) target = $region21
  $region20: #{tpu_custom_call.1} parent=0 // pred_region
    _
  $region21: #{tpu_custom_call.1} parent=0 // pred_fallthru
    _

</llo_original>
